<compile_context>
chip_gen: v7x
topology: tpu7x:2x2x1
jax: 0.10.0
libtpu: 0.0.40
codegen_flags: <defaults>
</compile_context>

<pallas_src>
import functools

import jax
import jax.numpy as jnp
from jax.experimental import pallas as pl
from jax.experimental.pallas import tpu as pltpu


def _se_kernel(x_ref, w1t_ref, w2_ref, o_ref, *, hw_true):
    # x_ref : (b_blk, C, HW_pad)  lane axis = padded H*W
    # w1t_ref: (C, Cr)   first Linear weight, pre-transposed (in, out)
    # w2_ref : (C, Cr)   second Linear weight in nn.Linear layout (out, in)

    # --- AdaptiveAvgPool2d(1): lane (XLU) reduction; divide by the TRUE H*W
    #     so zero-padding of the spatial axis never skews the mean. ---
    xf = x_ref[...].astype(jnp.float32)                       # (b, C, HW_pad)
    pooled = jnp.sum(xf, axis=-1, keepdims=True) * (1.0 / hw_true)  # (b, C, 1)
    del xf                                                    # don't keep x live

    w1t = w1t_ref[...].astype(jnp.float32)                    # (C, Cr)
    w2 = w2_ref[...].astype(jnp.float32)                      # (C, Cr)

    # --- FC1 (no bias) + ReLU: reduce over C on the SUBLANE axis. ---
    # (b, C, 1) * (1, C, Cr) -> (b, C, Cr) -> sum over C -> (b, Cr)
    h = jnp.maximum(jnp.sum(pooled * w1t[None], axis=1), 0.0)

    # --- FC2 (no bias) + Sigmoid: reduce over Cr (lanes), keepdims so the gate
    #     comes out as (b, C, 1) with C still on sublanes. ---
    y = jax.nn.sigmoid(
        jnp.sum(h[:, None, :] * w2[None], axis=-1, keepdims=True))  # (b, C, 1)

    # --- Channel-wise rescale: reload x from VMEM (vld is a free slot). ---
    o_ref[...] = (x_ref[...].astype(jnp.float32) * y).astype(o_ref.dtype)


def squeeze_excite_block(x, w1, w2, *, block_budget_bytes=4 << 20):
    """x: (B, C, H, W); w1: (C//r, C); w2: (C, C//r). Returns (B, C, H, W).

    Any float dtype for x (f32/bf16); compute is internally f32.
    """
    B, C, H, W = x.shape
    Cr = w1.shape[0]
    HW = H * W
    HW_pad = 128 * pl.cdiv(HW, 128)        # lane-dense stores for any stage shape

    x3 = x.reshape(B, C, HW)
    if HW_pad != HW:
        x3 = jnp.pad(x3, ((0, 0), (0, 0), (0, HW_pad - HW)))

    # --- batch block sizing: as many elements per step as the VMEM budget
    #     allows (double-buffered in + out), shrunk to a divisor of B. ---
    itemsize = jnp.dtype(x.dtype).itemsize
    per_elem_bytes = C * HW_pad * itemsize
    b_blk = int(max(1, min(B, block_budget_bytes // per_elem_bytes)))
    while B % b_blk:
        b_blk -= 1
    n_steps = B // b_blk

    # Only shard across TensorCores when each core gets >= 2 steps.
    semantics = ("parallel",) if n_steps >= 4 else ("arbitrary",)

    # Explicit scoped-VMEM limit: 2 bufs x (in + out) blocks + weights + slack.
    vmem_needed = 4 * b_blk * per_elem_bytes + 4 * 2 * C * Cr + (2 << 20)
    vmem_limit = int(min(max(vmem_needed, 16 << 20), 48 << 20))

    w1t = jnp.transpose(w1)                 # (C, Cr): keeps C on sublanes in FC1

    flops = B * (C * HW                     # pooling adds
                 + 2 * C * Cr               # FC1
                 + 2 * Cr * C               # FC2
                 + C * HW)                  # rescale
    bytes_accessed = (2 * B * C * HW_pad + 2 * C * Cr) * itemsize

    kernel = functools.partial(_se_kernel, hw_true=float(HW))

    out = pl.pallas_call(
        kernel,
        out_shape=jax.ShapeDtypeStruct((B, C, HW_pad), x.dtype),
        grid_spec=pltpu.PrefetchScalarGridSpec(
            num_scalar_prefetch=0,
            grid=(n_steps,),
            in_specs=[
                pl.BlockSpec((b_blk, C, HW_pad), lambda i: (i, 0, 0)),
                pl.BlockSpec((C, Cr), lambda i: (0, 0)),   # full-extent weights
                pl.BlockSpec((C, Cr), lambda i: (0, 0)),
            ],
            out_specs=pl.BlockSpec((b_blk, C, HW_pad), lambda i: (i, 0, 0)),
        ),
        compiler_params=pltpu.CompilerParams(
            dimension_semantics=semantics,
            vmem_limit_bytes=vmem_limit),
        cost_estimate=pl.CostEstimate(
            flops=flops, transcendentals=B * C, bytes_accessed=bytes_accessed),
    )(x3, w1t, w2)

    if HW_pad != HW:
        out = out[:, :, :HW]
    return out.reshape(B, C, H, W)


if __name__ == "__main__":
    # Channels must be >= reduction (16); use the first ResUNet++ width where
    # the SE block appears.
    B, C, H, W = 2, 64, 16, 16
    reduction = 16
    Cr = C // reduction

    key = jax.random.PRNGKey(0)
    kx, k1, k2 = jax.random.split(key, 3)
    x = jax.random.normal(kx, (B, C, H, W), jnp.float32)
    # PyTorch nn.Linear weight layout: (out_features, in_features), bias=False.
    w1 = jax.random.normal(k1, (Cr, C), jnp.float32) * (1.0 / C) ** 0.5
    w2 = jax.random.normal(k2, (C, Cr), jnp.float32) * (1.0 / Cr) ** 0.5

    fwd = jax.jit(squeeze_excite_block)
    out = jax.block_until_ready(fwd(x, w1, w2))

    # Pure-JAX reference of the PyTorch forward.
    y_ref = jnp.mean(x, axis=(2, 3))                      # (B, C)
    y_ref = jnp.maximum(y_ref @ w1.T, 0.0)                # (B, C//r)
    y_ref = jax.nn.sigmoid(y_ref @ w2.T)                  # (B, C)
    ref = x * y_ref[:, :, None, None]

    assert out.shape == (B, C, H, W), out.shape
    assert bool(jnp.all(jnp.isfinite(out)))
    err = float(jnp.max(jnp.abs(out - ref)))
    assert jnp.allclose(out, ref, atol=1e-5, rtol=1e-5), err
    print("KERNEL_OK")
</pallas_src>

<mosaic_0001>
module attributes {stable_mosaic.version = 11 : i64} {
  func.func @_se_kernel(%arg0: i32, %arg1: memref<2x64x256xf32, #tpu.memory_space<vmem>>, %arg2: memref<64x4xf32, #tpu.memory_space<vmem>>, %arg3: memref<64x4xf32, #tpu.memory_space<vmem>>, %arg4: memref<2x64x256xf32, #tpu.memory_space<vmem>>) attributes {dimension_semantics = [#tpu.dimension_semantics<arbitrary>], iteration_bounds = array<i64: 1>, scalar_prefetch = 0 : i64, scratch_operands = 0 : i64, tpu.core_type = #tpu.core_type<tc>, window_params = [{transform_indices = @transform_0, window_bounds = array<i64: 2, 64, 256>}, {pipeline_mode = #tpu.pipeline_mode<synchronous>, transform_indices = @transform_1, window_bounds = array<i64: 64, 4>}, {pipeline_mode = #tpu.pipeline_mode<synchronous>, transform_indices = @transform_2, window_bounds = array<i64: 64, 4>}, {transform_indices = @transform_3, window_bounds = array<i64: 2, 64, 256>}]} {
    %c0 = arith.constant 0 : index
    %c0_0 = arith.constant 0 : index
    %c0_1 = arith.constant 0 : index
    %0 = vector.load %arg1[%c0, %c0_0, %c0_1] : memref<2x64x256xf32, #tpu.memory_space<vmem>>, vector<2x64x256xf32>
    %cst = arith.constant dense<0.000000e+00> : vector<2x64xf32>
    %1 = vector.multi_reduction <add>, %0, %cst [2] : vector<2x64x256xf32> to vector<2x64xf32>
    %2 = vector.shape_cast %1 : vector<2x64xf32> to vector<2x64x1xf32>
    %cst_2 = arith.constant 3.906250e-03 : f32
    %3 = vector.broadcast %cst_2 : f32 to vector<2x64x1xf32>
    %4 = arith.mulf %2, %3 : vector<2x64x1xf32>
    %c0_3 = arith.constant 0 : index
    %c0_4 = arith.constant 0 : index
    %5 = vector.load %arg2[%c0_3, %c0_4] : memref<64x4xf32, #tpu.memory_space<vmem>>, vector<64x4xf32>
    %c0_5 = arith.constant 0 : index
    %c0_6 = arith.constant 0 : index
    %6 = vector.load %arg3[%c0_5, %c0_6] : memref<64x4xf32, #tpu.memory_space<vmem>>, vector<64x4xf32>
    %7 = vector.shape_cast %5 : vector<64x4xf32> to vector<1x64x4xf32>
    %8 = vector.broadcast %4 : vector<2x64x1xf32> to vector<2x64x4xf32>
    %9 = vector.broadcast %7 : vector<1x64x4xf32> to vector<2x64x4xf32>
    %10 = arith.mulf %8, %9 : vector<2x64x4xf32>
    %cst_7 = arith.constant dense<0.000000e+00> : vector<2x4xf32>
    %11 = vector.multi_reduction <add>, %10, %cst_7 [1] : vector<2x64x4xf32> to vector<2x4xf32>
    %cst_8 = arith.constant 0.000000e+00 : f32
    %12 = vector.broadcast %cst_8 : f32 to vector<2x4xf32>
    %13 = arith.maximumf %11, %12 : vector<2x4xf32>
    %14 = vector.shape_cast %13 : vector<2x4xf32> to vector<2x1x4xf32>
    %15 = vector.shape_cast %6 : vector<64x4xf32> to vector<1x64x4xf32>
    %16 = vector.broadcast %14 : vector<2x1x4xf32> to vector<2x64x4xf32>
    %17 = vector.broadcast %15 : vector<1x64x4xf32> to vector<2x64x4xf32>
    %18 = arith.mulf %16, %17 : vector<2x64x4xf32>
    %cst_9 = arith.constant dense<0.000000e+00> : vector<2x64xf32>
    %19 = vector.multi_reduction <add>, %18, %cst_9 [2] : vector<2x64x4xf32> to vector<2x64xf32>
    %20 = vector.shape_cast %19 : vector<2x64xf32> to vector<2x64x1xf32>
    %21 = arith.negf %20 : vector<2x64x1xf32>
    %22 = math.exp %21 : vector<2x64x1xf32>
    %cst_10 = arith.constant 1.000000e+00 : f32
    %23 = vector.broadcast %cst_10 : f32 to vector<2x64x1xf32>
    %24 = arith.addf %23, %22 : vector<2x64x1xf32>
    %25 = arith.divf %23, %24 : vector<2x64x1xf32>
    %c0_11 = arith.constant 0 : index
    %c0_12 = arith.constant 0 : index
    %c0_13 = arith.constant 0 : index
    %26 = vector.load %arg1[%c0_11, %c0_12, %c0_13] : memref<2x64x256xf32, #tpu.memory_space<vmem>>, vector<2x64x256xf32>
    %27 = vector.broadcast %25 : vector<2x64x1xf32> to vector<2x64x256xf32>
    %28 = arith.mulf %26, %27 : vector<2x64x256xf32>
    %c0_14 = arith.constant 0 : index
    %c0_15 = arith.constant 0 : index
    %c0_16 = arith.constant 0 : index
    %29 = vector.load %arg4[%c0_14, %c0_15, %c0_16] : memref<2x64x256xf32, #tpu.memory_space<vmem>>, vector<2x64x256xf32>
    tpu.vector_store %arg4[%c0_14, %c0_15, %c0_16], %28 {strides = array<i32>} : memref<2x64x256xf32, #tpu.memory_space<vmem>>, vector<2x64x256xf32>,
    return
  }
  func.func @transform_0(%arg0: i32) -> (i32, i32, i32) {
    %c0_i32 = arith.constant 0 : i32
    %c0_i32_0 = arith.constant 0 : i32
    %c0_i32_1 = arith.constant 0 : i32
    return %arg0, %c0_i32, %c0_i32_0 : i32, i32, i32
  }
  func.func @transform_1(%arg0: i32) -> (i32, i32) {
    %c0_i32 = arith.constant 0 : i32
    %c0_i32_0 = arith.constant 0 : i32
    %c0_i32_1 = arith.constant 0 : i32
    return %c0_i32, %c0_i32_0 : i32, i32
  }
  func.func @transform_2(%arg0: i32) -> (i32, i32) {
    %c0_i32 = arith.constant 0 : i32
    %c0_i32_0 = arith.constant 0 : i32
    %c0_i32_1 = arith.constant 0 : i32
    return %c0_i32, %c0_i32_0 : i32, i32
  }
  func.func @transform_3(%arg0: i32) -> (i32, i32, i32) {
    %c0_i32 = arith.constant 0 : i32
    %c0_i32_0 = arith.constant 0 : i32
    %c0_i32_1 = arith.constant 0 : i32
    return %arg0, %c0_i32, %c0_i32_0 : i32, i32, i32
  }
}

</mosaic_0001>

<llo_original>
// kernel: squeeze_excite_block.1
$region0: #{squeeze_excite_block.1}
  #allocation0 [shape = 'u32[]', space=smem, size = 0x4, offset = 0x4, fixed_abs, tag = 'smem constant byte address 0x4 - core index']
  #allocation1 [shape = 'u32[144,128]{1,0:T(1,128)}', space=vmem, size = 0x12000, scoped, tag = 'internal scratch']
  %s0 = inlined_call_operand.vmem [shape: f32[2,64,256], index: 0, kind: input, shape index: {}]
  %s1 = inlined_call_operand.vmem [shape: f32[64,4], index: 1, kind: input, shape index: {}]
  %s2 = inlined_call_operand.vmem [shape: f32[64,4], index: 2, kind: input, shape index: {}]
  %s3 = inlined_call_operand.vmem [shape: f32[2,64,256], index: 3, kind: output, shape index: {}]
  %s4 = sld [smem:[#allocation0]]
  $region22: #{squeeze_excite_block.1} parent=0
    _
  %s6 = ssub.s32 1, %s4
  %s7 = scalar_select 0, %s6, %s4
  // Predicated region
  $region2: #{squeeze_excite_block.1} parent=0 // pred_check
    _
  $region3: #{squeeze_excite_block.1} parent=0 // pred_check_branch
    %9 = sbr.rel (0) target = $region5
  $region4: #{squeeze_excite_block.1} parent=0 // pred_region
    _
  $region5: #{squeeze_excite_block.1} parent=0 // pred_fallthru
    _
  // Predicated region
  $region6: #{squeeze_excite_block.1} parent=0 // pred_check
    _
  $region7: #{squeeze_excite_block.1} parent=0 // pred_check_branch
    %11 = sbr.rel (0) target = $region9
  $region8: #{squeeze_excite_block.1} parent=0 // pred_region
    _
  $region9: #{squeeze_excite_block.1} parent=0 // pred_fallthru
    _
  // Predicated region
  $region10: #{squeeze_excite_block.1} parent=0 // pred_check
    _
  $region11: #{squeeze_excite_block.1} parent=0 // pred_check_branch
    %13 = sbr.rel (0) target = $region13
  $region12: #{squeeze_excite_block.1} parent=0 // pred_region
    _
  $region13: #{squeeze_excite_block.1} parent=0 // pred_fallthru
    _
  %v14 = vld [vmem:[%s0] sm:$0xff]
  %v15 = vld [vmem:[%s0 + $0x8] sm:$0xff]
  %v16 = vld [vmem:[%s0 + $0x10] sm:$0xff]
  %v17 = vld [vmem:[%s0 + $0x18] sm:$0xff]
  %v18 = vld [vmem:[%s0 + $0x20] sm:$0xff]
  %v19 = vld [vmem:[%s0 + $0x28] sm:$0xff]
  %v20 = vld [vmem:[%s0 + $0x30] sm:$0xff]
  %v21 = vld [vmem:[%s0 + $0x38] sm:$0xff]
  %v22 = vld [vmem:[%s0 + $0x40] sm:$0xff]
  %v23 = vld [vmem:[%s0 + $0x48] sm:$0xff]
  %v24 = vld [vmem:[%s0 + $0x50] sm:$0xff]
  %v25 = vld [vmem:[%s0 + $0x58] sm:$0xff]
  %v26 = vld [vmem:[%s0 + $0x60] sm:$0xff]
  %v27 = vld [vmem:[%s0 + $0x68] sm:$0xff]
  %v28 = vld [vmem:[%s0 + $0x70] sm:$0xff]
  %v29 = vld [vmem:[%s0 + $0x78] sm:$0xff]
  %v30 = vld [vmem:[%s0 + $0x80] sm:$0xff]
  %v31 = vld [vmem:[%s0 + $0x88] sm:$0xff]
  %v32 = vld [vmem:[%s0 + $0x90] sm:$0xff]
  %v33 = vld [vmem:[%s0 + $0x98] sm:$0xff]
  %v34 = vld [vmem:[%s0 + $0xa0] sm:$0xff]
  %v35 = vld [vmem:[%s0 + $0xa8] sm:$0xff]
  %v36 = vld [vmem:[%s0 + $0xb0] sm:$0xff]
  %v37 = vld [vmem:[%s0 + $0xb8] sm:$0xff]
  %v38 = vld [vmem:[%s0 + $0xc0] sm:$0xff]
  %v39 = vld [vmem:[%s0 + $0xc8] sm:$0xff]
  %v40 = vld [vmem:[%s0 + $0xd0] sm:$0xff]
  %v41 = vld [vmem:[%s0 + $0xd8] sm:$0xff]
  %v42 = vld [vmem:[%s0 + $0xe0] sm:$0xff]
  %v43 = vld [vmem:[%s0 + $0xe8] sm:$0xff]
  %v44 = vld [vmem:[%s0 + $0xf0] sm:$0xff]
  %v45 = vld [vmem:[%s0 + $0xf8] sm:$0xff]
  %v46 = vadd.f32 %v14, %v15
  %47 = vadd.xlane.f32.xlu0 %v46
  %v48 = vpop.xlane.xlu0 %47
  %v49 = vadd.f32 %v16, %v17
  %50 = vadd.xlane.f32.xlu0 %v49
  %v51 = vpop.xlane.xlu0 %50
  %v52 = vadd.f32 %v18, %v19
  %53 = vadd.xlane.f32.xlu0 %v52
  %v54 = vpop.xlane.xlu0 %53
  %v55 = vadd.f32 %v20, %v21
  %56 = vadd.xlane.f32.xlu0 %v55
  %v57 = vpop.xlane.xlu0 %56
  %v58 = vadd.f32 %v22, %v23
  %59 = vadd.xlane.f32.xlu0 %v58
  %v60 = vpop.xlane.xlu0 %59
  %v61 = vadd.f32 %v24, %v25
  %62 = vadd.xlane.f32.xlu0 %v61
  %v63 = vpop.xlane.xlu0 %62
  %v64 = vadd.f32 %v26, %v27
  %65 = vadd.xlane.f32.xlu0 %v64
  %v66 = vpop.xlane.xlu0 %65
  %v67 = vadd.f32 %v28, %v29
  %68 = vadd.xlane.f32.xlu0 %v67
  %v69 = vpop.xlane.xlu0 %68
  %v70 = vadd.f32 %v30, %v31
  %71 = vadd.xlane.f32.xlu0 %v70
  %v72 = vpop.xlane.xlu0 %71
  %v73 = vadd.f32 %v32, %v33
  %74 = vadd.xlane.f32.xlu0 %v73
  %v75 = vpop.xlane.xlu0 %74
  %v76 = vadd.f32 %v34, %v35
  %77 = vadd.xlane.f32.xlu0 %v76
  %v78 = vpop.xlane.xlu0 %77
  %v79 = vadd.f32 %v36, %v37
  %80 = vadd.xlane.f32.xlu0 %v79
  %v81 = vpop.xlane.xlu0 %80
  %v82 = vadd.f32 %v38, %v39
  %83 = vadd.xlane.f32.xlu0 %v82
  %v84 = vpop.xlane.xlu0 %83
  %v85 = vadd.f32 %v40, %v41
  %86 = vadd.xlane.f32.xlu0 %v85
  %v87 = vpop.xlane.xlu0 %86
  %v88 = vadd.f32 %v42, %v43
  %89 = vadd.xlane.f32.xlu0 %v88
  %v90 = vpop.xlane.xlu0 %89
  %v91 = vadd.f32 %v44, %v45
  %92 = vadd.xlane.f32.xlu0 %v91
  %v93 = vpop.xlane.xlu0 %92
  %v94 = vmul.f32 %v48, 0.00390625
  %v95 = vmul.f32 %v51, 0.00390625
  %v96 = vmul.f32 %v54, 0.00390625
  %v97 = vmul.f32 %v57, 0.00390625
  %v98 = vmul.f32 %v60, 0.00390625
  %v99 = vmul.f32 %v63, 0.00390625
  %v100 = vmul.f32 %v66, 0.00390625
  %v101 = vmul.f32 %v69, 0.00390625
  %v102 = vmul.f32 %v72, 0.00390625
  %v103 = vmul.f32 %v75, 0.00390625
  %v104 = vmul.f32 %v78, 0.00390625
  %v105 = vmul.f32 %v81, 0.00390625
  %v106 = vmul.f32 %v84, 0.00390625
  %v107 = vmul.f32 %v87, 0.00390625
  %v108 = vmul.f32 %v90, 0.00390625
  %v109 = vmul.f32 %v93, 0.00390625
  %v110 = vld [vmem:[%s1] sm:$0xff]
  %v111 = vld [vmem:[%s1 + $0x8] sm:$0xff]
  %v112 = vld [vmem:[%s1 + $0x10] sm:$0xff]
  %v113 = vld [vmem:[%s1 + $0x18] sm:$0xff]
  %v114 = vld [vmem:[%s1 + $0x20] sm:$0xff]
  %v115 = vld [vmem:[%s1 + $0x28] sm:$0xff]
  %v116 = vld [vmem:[%s1 + $0x30] sm:$0xff]
  %v117 = vld [vmem:[%s1 + $0x38] sm:$0xff]
  %v118 = vld [vmem:[%s2] sm:$0xff]
  %v119 = vld [vmem:[%s2 + $0x8] sm:$0xff]
  %v120 = vld [vmem:[%s2 + $0x10] sm:$0xff]
  %v121 = vld [vmem:[%s2 + $0x18] sm:$0xff]
  %v122 = vld [vmem:[%s2 + $0x20] sm:$0xff]
  %v123 = vld [vmem:[%s2 + $0x28] sm:$0xff]
  %v124 = vld [vmem:[%s2 + $0x30] sm:$0xff]
  %v125 = vld [vmem:[%s2 + $0x38] sm:$0xff]
  %v126 = vmul.f32 %v94, %v110
  %v127 = vmul.f32 %v95, %v111
  %v128 = vmul.f32 %v96, %v112
  %v129 = vmul.f32 %v97, %v113
  %v130 = vmul.f32 %v98, %v114
  %v131 = vmul.f32 %v99, %v115
  %v132 = vmul.f32 %v100, %v116
  %v133 = vmul.f32 %v101, %v117
  %v134 = vmul.f32 %v102, %v110
  %v135 = vmul.f32 %v103, %v111
  %v136 = vmul.f32 %v104, %v112
  %v137 = vmul.f32 %v105, %v113
  %v138 = vmul.f32 %v106, %v114
  %v139 = vmul.f32 %v107, %v115
  %v140 = vmul.f32 %v108, %v116
  %v141 = vmul.f32 %v109, %v117
  %vm142 = vcmask 31744
  %v143 = vsel %vm142, %v126, 0.0
  %v144 = vsel %vm142, %v127, 0.0
  %v145 = vadd.f32 %v143, %v144
  %v146 = vsel %vm142, %v128, 0.0
  %v147 = vadd.f32 %v145, %v146
  %v148 = vsel %vm142, %v129, 0.0
  %v149 = vadd.f32 %v147, %v148
  %v150 = vsel %vm142, %v130, 0.0
  %v151 = vadd.f32 %v149, %v150
  %v152 = vsel %vm142, %v131, 0.0
  %v153 = vadd.f32 %v151, %v152
  %v154 = vsel %vm142, %v132, 0.0
  %v155 = vadd.f32 %v153, %v154
  %v156 = vsel %vm142, %v133, 0.0
  %v157 = vadd.f32 %v155, %v156
  %v158 = vrot.slane %v157, 4
  %v159 = vadd.f32 %v157, %v158
  %v160 = vrot.slane %v159, 2
  %v161 = vadd.f32 %v159, %v160
  %v162 = vrot.slane %v161, 1
  %v163 = vadd.f32 %v161, %v162
  %v164 = vsel %vm142, %v134, 0.0
  %v165 = vsel %vm142, %v135, 0.0
  %v166 = vadd.f32 %v164, %v165
  %v167 = vsel %vm142, %v136, 0.0
  %v168 = vadd.f32 %v166, %v167
  %v169 = vsel %vm142, %v137, 0.0
  %v170 = vadd.f32 %v168, %v169
  %v171 = vsel %vm142, %v138, 0.0
  %v172 = vadd.f32 %v170, %v171
  %v173 = vsel %vm142, %v139, 0.0
  %v174 = vadd.f32 %v172, %v173
  %v175 = vsel %vm142, %v140, 0.0
  %v176 = vadd.f32 %v174, %v175
  %v177 = vsel %vm142, %v141, 0.0
  %v178 = vadd.f32 %v176, %v177
  %v179 = vrot.slane %v178, 4
  %v180 = vadd.f32 %v178, %v179
  %v181 = vrot.slane %v180, 2
  %v182 = vadd.f32 %v180, %v181
  %v183 = vrot.slane %v182, 1
  %v184 = vadd.f32 %v182, %v183
  %v185 = vmax.f32 %v163, 0.0
  %v186 = vmax.f32 %v184, 0.0
  %v187 = vmul.f32 %v185, %v118
  %v188 = vmul.f32 %v185, %v119
  %v189 = vmul.f32 %v185, %v120
  %v190 = vmul.f32 %v185, %v121
  %v191 = vmul.f32 %v185, %v122
  %v192 = vmul.f32 %v185, %v123
  %v193 = vmul.f32 %v185, %v124
  %v194 = vmul.f32 %v185, %v125
  %v195 = vmul.f32 %v186, %v118
  %v196 = vmul.f32 %v186, %v119
  %v197 = vmul.f32 %v186, %v120
  %v198 = vmul.f32 %v186, %v121
  %v199 = vmul.f32 %v186, %v122
  %v200 = vmul.f32 %v186, %v123
  %v201 = vmul.f32 %v186, %v124
  %v202 = vmul.f32 %v186, %v125
  %v203 = vsel %vm142, %v187, 0.0
  %204 = vadd.xlane.f32.xlu0 %v203
  %v205 = vpop.xlane.xlu0 %204
  %v206 = vsel %vm142, %v188, 0.0
  %207 = vadd.xlane.f32.xlu0 %v206
  %v208 = vpop.xlane.xlu0 %207
  %v209 = vsel %vm142, %v189, 0.0
  %210 = vadd.xlane.f32.xlu0 %v209
  %v211 = vpop.xlane.xlu0 %210
  %v212 = vsel %vm142, %v190, 0.0
  %213 = vadd.xlane.f32.xlu0 %v212
  %v214 = vpop.xlane.xlu0 %213
  %v215 = vsel %vm142, %v191, 0.0
  %216 = vadd.xlane.f32.xlu0 %v215
  %v217 = vpop.xlane.xlu0 %216
  %v218 = vsel %vm142, %v192, 0.0
  %219 = vadd.xlane.f32.xlu0 %v218
  %v220 = vpop.xlane.xlu0 %219
  %v221 = vsel %vm142, %v193, 0.0
  %222 = vadd.xlane.f32.xlu0 %v221
  %v223 = vpop.xlane.xlu0 %222
  %v224 = vsel %vm142, %v194, 0.0
  %225 = vadd.xlane.f32.xlu0 %v224
  %v226 = vpop.xlane.xlu0 %225
  %v227 = vsel %vm142, %v195, 0.0
  %228 = vadd.xlane.f32.xlu0 %v227
  %v229 = vpop.xlane.xlu0 %228
  %v230 = vsel %vm142, %v196, 0.0
  %231 = vadd.xlane.f32.xlu0 %v230
  %v232 = vpop.xlane.xlu0 %231
  %v233 = vsel %vm142, %v197, 0.0
  %234 = vadd.xlane.f32.xlu0 %v233
  %v235 = vpop.xlane.xlu0 %234
  %v236 = vsel %vm142, %v198, 0.0
  %237 = vadd.xlane.f32.xlu0 %v236
  %v238 = vpop.xlane.xlu0 %237
  %v239 = vsel %vm142, %v199, 0.0
  %240 = vadd.xlane.f32.xlu0 %v239
  %v241 = vpop.xlane.xlu0 %240
  %v242 = vsel %vm142, %v200, 0.0
  %243 = vadd.xlane.f32.xlu0 %v242
  %v244 = vpop.xlane.xlu0 %243
  %v245 = vsel %vm142, %v201, 0.0
  %246 = vadd.xlane.f32.xlu0 %v245
  %v247 = vpop.xlane.xlu0 %246
  %v248 = vsel %vm142, %v202, 0.0
  %249 = vadd.xlane.f32.xlu0 %v248
  %v250 = vpop.xlane.xlu0 %249
  %v251 = vxor.u32 %v205, 2147483648
  %v252 = vxor.u32 %v208, 2147483648
  %v253 = vxor.u32 %v211, 2147483648
  %v254 = vxor.u32 %v214, 2147483648
  %v255 = vxor.u32 %v217, 2147483648
  %v256 = vxor.u32 %v220, 2147483648
  %v257 = vxor.u32 %v223, 2147483648
  %v258 = vxor.u32 %v226, 2147483648
  %v259 = vxor.u32 %v229, 2147483648
  %v260 = vxor.u32 %v232, 2147483648
  %v261 = vxor.u32 %v235, 2147483648
  %v262 = vxor.u32 %v238, 2147483648
  %v263 = vxor.u32 %v241, 2147483648
  %v264 = vxor.u32 %v244, 2147483648
  %v265 = vxor.u32 %v247, 2147483648
  %v266 = vxor.u32 %v250, 2147483648
  %v267 = vmul.f32 %v251, 1.442695
  %v268 = vpow.pop %v267
  %v269 = vmul.f32 %v252, 1.442695
  %v270 = vpow.pop %v269
  %v271 = vmul.f32 %v253, 1.442695
  %v272 = vpow.pop %v271
  %v273 = vmul.f32 %v254, 1.442695
  %v274 = vpow.pop %v273
  %v275 = vmul.f32 %v255, 1.442695
  %v276 = vpow.pop %v275
  %v277 = vmul.f32 %v256, 1.442695
  %v278 = vpow.pop %v277
  %v279 = vmul.f32 %v257, 1.442695
  %v280 = vpow.pop %v279
  %v281 = vmul.f32 %v258, 1.442695
  %v282 = vpow.pop %v281
  %v283 = vmul.f32 %v259, 1.442695
  %v284 = vpow.pop %v283
  %v285 = vmul.f32 %v260, 1.442695
  %v286 = vpow.pop %v285
  %v287 = vmul.f32 %v261, 1.442695
  %v288 = vpow.pop %v287
  %v289 = vmul.f32 %v262, 1.442695
  %v290 = vpow.pop %v289
  %v291 = vmul.f32 %v263, 1.442695
  %v292 = vpow.pop %v291
  %v293 = vmul.f32 %v264, 1.442695
  %v294 = vpow.pop %v293
  %v295 = vmul.f32 %v265, 1.442695
  %v296 = vpow.pop %v295
  %v297 = vmul.f32 %v266, 1.442695
  %v298 = vpow.pop %v297
  %v299 = vadd.f32 %v268, 1.0
  %v300 = vadd.f32 %v270, 1.0
  %v301 = vadd.f32 %v272, 1.0
  %v302 = vadd.f32 %v274, 1.0
  %v303 = vadd.f32 %v276, 1.0
  %v304 = vadd.f32 %v278, 1.0
  %v305 = vadd.f32 %v280, 1.0
  %v306 = vadd.f32 %v282, 1.0
  %v307 = vadd.f32 %v284, 1.0
  %v308 = vadd.f32 %v286, 1.0
  %v309 = vadd.f32 %v288, 1.0
  %v310 = vadd.f32 %v290, 1.0
  %v311 = vadd.f32 %v292, 1.0
  %v312 = vadd.f32 %v294, 1.0
  %v313 = vadd.f32 %v296, 1.0
  %v314 = vadd.f32 %v298, 1.0
  %v315 = vrcp.pop %v299
  %v316 = vmul.f32 1.0, %v315
  %v317 = vrcp.pop %v300
  %v318 = vmul.f32 1.0, %v317
  %v319 = vrcp.pop %v301
  %v320 = vmul.f32 1.0, %v319
  %v321 = vrcp.pop %v302
  %v322 = vmul.f32 1.0, %v321
  %v323 = vrcp.pop %v303
  %v324 = vmul.f32 1.0, %v323
  %v325 = vrcp.pop %v304
  %v326 = vmul.f32 1.0, %v325
  %v327 = vrcp.pop %v305
  %v328 = vmul.f32 1.0, %v327
  %v329 = vrcp.pop %v306
  %v330 = vmul.f32 1.0, %v329
  %v331 = vrcp.pop %v307
  %v332 = vmul.f32 1.0, %v331
  %v333 = vrcp.pop %v308
  %v334 = vmul.f32 1.0, %v333
  %v335 = vrcp.pop %v309
  %v336 = vmul.f32 1.0, %v335
  %v337 = vrcp.pop %v310
  %v338 = vmul.f32 1.0, %v337
  %v339 = vrcp.pop %v311
  %v340 = vmul.f32 1.0, %v339
  %v341 = vrcp.pop %v312
  %v342 = vmul.f32 1.0, %v341
  %v343 = vrcp.pop %v313
  %v344 = vmul.f32 1.0, %v343
  %v345 = vrcp.pop %v314
  %v346 = vmul.f32 1.0, %v345
  %v347 = vmul.f32 %v14, %v316
  %v348 = vmul.f32 %v15, %v316
  %v349 = vmul.f32 %v16, %v318
  %v350 = vmul.f32 %v17, %v318
  %v351 = vmul.f32 %v18, %v320
  %v352 = vmul.f32 %v19, %v320
  %v353 = vmul.f32 %v20, %v322
  %v354 = vmul.f32 %v21, %v322
  %v355 = vmul.f32 %v22, %v324
  %v356 = vmul.f32 %v23, %v324
  %v357 = vmul.f32 %v24, %v326
  %v358 = vmul.f32 %v25, %v326
  %v359 = vmul.f32 %v26, %v328
  %v360 = vmul.f32 %v27, %v328
  %v361 = vmul.f32 %v28, %v330
  %v362 = vmul.f32 %v29, %v330
  %v363 = vmul.f32 %v30, %v332
  %v364 = vmul.f32 %v31, %v332
  %v365 = vmul.f32 %v32, %v334
  %v366 = vmul.f32 %v33, %v334
  %v367 = vmul.f32 %v34, %v336
  %v368 = vmul.f32 %v35, %v336
  %v369 = vmul.f32 %v36, %v338
  %v370 = vmul.f32 %v37, %v338
  %v371 = vmul.f32 %v38, %v340
  %v372 = vmul.f32 %v39, %v340
  %v373 = vmul.f32 %v40, %v342
  %v374 = vmul.f32 %v41, %v342
  %v375 = vmul.f32 %v42, %v344
  %v376 = vmul.f32 %v43, %v344
  %v377 = vmul.f32 %v44, %v346
  %v378 = vmul.f32 %v45, %v346
  %379 = vst [vmem:[%s3] sm:$0xff] %v347
  %380 = vst [vmem:[%s3 + $0x8] sm:$0xff] %v348
  %381 = vst [vmem:[%s3 + $0x10] sm:$0xff] %v349
  %382 = vst [vmem:[%s3 + $0x18] sm:$0xff] %v350
  %383 = vst [vmem:[%s3 + $0x20] sm:$0xff] %v351
  %384 = vst [vmem:[%s3 + $0x28] sm:$0xff] %v352
  %385 = vst [vmem:[%s3 + $0x30] sm:$0xff] %v353
  %386 = vst [vmem:[%s3 + $0x38] sm:$0xff] %v354
  %387 = vst [vmem:[%s3 + $0x40] sm:$0xff] %v355
  %388 = vst [vmem:[%s3 + $0x48] sm:$0xff] %v356
  %389 = vst [vmem:[%s3 + $0x50] sm:$0xff] %v357
  %390 = vst [vmem:[%s3 + $0x58] sm:$0xff] %v358
  %391 = vst [vmem:[%s3 + $0x60] sm:$0xff] %v359
  %392 = vst [vmem:[%s3 + $0x68] sm:$0xff] %v360
  %393 = vst [vmem:[%s3 + $0x70] sm:$0xff] %v361
  %394 = vst [vmem:[%s3 + $0x78] sm:$0xff] %v362
  %395 = vst [vmem:[%s3 + $0x80] sm:$0xff] %v363
  %396 = vst [vmem:[%s3 + $0x88] sm:$0xff] %v364
  %397 = vst [vmem:[%s3 + $0x90] sm:$0xff] %v365
  %398 = vst [vmem:[%s3 + $0x98] sm:$0xff] %v366
  %399 = vst [vmem:[%s3 + $0xa0] sm:$0xff] %v367
  %400 = vst [vmem:[%s3 + $0xa8] sm:$0xff] %v368
  %401 = vst [vmem:[%s3 + $0xb0] sm:$0xff] %v369
  %402 = vst [vmem:[%s3 + $0xb8] sm:$0xff] %v370
  %403 = vst [vmem:[%s3 + $0xc0] sm:$0xff] %v371
  %404 = vst [vmem:[%s3 + $0xc8] sm:$0xff] %v372
  %405 = vst [vmem:[%s3 + $0xd0] sm:$0xff] %v373
  %406 = vst [vmem:[%s3 + $0xd8] sm:$0xff] %v374
  %407 = vst [vmem:[%s3 + $0xe0] sm:$0xff] %v375
  %408 = vst [vmem:[%s3 + $0xe8] sm:$0xff] %v376
  %409 = vst [vmem:[%s3 + $0xf0] sm:$0xff] %v377
  %410 = vst [vmem:[%s3 + $0xf8] sm:$0xff] %v378
  // Predicated region
  $region14: #{squeeze_excite_block.1} parent=0 // pred_check
    _
  $region15: #{squeeze_excite_block.1} parent=0 // pred_check_branch
    %412 = sbr.rel (0) target = $region17
  $region16: #{squeeze_excite_block.1} parent=0 // pred_region
    _
  $region17: #{squeeze_excite_block.1} parent=0 // pred_fallthru
    _
  // Predicated region
  $region18: #{squeeze_excite_block.1} parent=0 // pred_check
    _
  $region19: #{squeeze_excite_block.1} parent=0 // pred_check_branch
    %414 = sbr.rel (0) target = $region21
  $region20: #{squeeze_excite_block.1} parent=0 // pred_region
    _
  $region21: #{squeeze_excite_block.1} parent=0 // pred_fallthru
    _

</llo_original>
